<compile_context>
chip_gen: v6e
topology: v6e:2x2x1
jax: 0.10.0
libtpu: 0.0.40
codegen_flags: <defaults>
</compile_context>

<pallas_src>
import functools

import numpy as np
import jax
import jax.numpy as jnp
from jax import lax
from jax.experimental import pallas as pl
from jax.experimental.pallas import tpu as pltpu

TOP_K = 5          # module default
_LANE = 128        # TPU lane width


def _round_up(n, m):
    return ((n + m - 1) // m) * m


# --------------------------------------------------------------------------
# Host-side, cached DFT weight construction (feedback item #1).
# Fused layout: forward  x @ W_fwd  -> [Re(0..Fh-1) | Nyq, Im(1..Fh-1)]
#               inverse  xf @ W_inv -> x_season
# The Nyquist (real) bin lives in the Im(DC) slot, which is identically zero,
# so the complex-bin width is Fh = L/2 (feedback item #3).
# --------------------------------------------------------------------------
@functools.lru_cache(maxsize=None)
def _dft_mats(L, mat_dtype_name):
    fh = L // 2
    fhp = _round_up(fh, _LANE)
    lp = _round_up(L, _LANE)

    n = np.arange(L, dtype=np.float64)[:, None]           # [L, 1]
    f = np.arange(fh, dtype=np.float64)[None, :]           # [1, Fh]
    ang = 2.0 * np.pi * n * f / L                           # [L, Fh]
    sign = np.cos(np.pi * np.arange(L, dtype=np.float64))   # (-1)^n

    w_fwd = np.zeros((lp, 2 * fhp), np.float64)
    w_fwd[:L, :fh] = np.cos(ang)                             # Re bins 0..Fh-1
    w_fwd[:L, fhp:fhp + fh] = -np.sin(ang)                   # Im bins 0..Fh-1 (col 0 is 0)
    w_fwd[:L, fhp] = sign                                    # Nyquist Re folded into Im(DC)

    w_inv = np.zeros((2 * fhp, lp), np.float64)
    w_inv[0, :L] = 1.0 / L                                   # DC
    if fh > 1:
        w_inv[1:fh, :L] = (2.0 / L) * np.cos(ang[:, 1:fh]).T
        w_inv[fhp + 1:fhp + fh, :L] = -(2.0 / L) * np.sin(ang[:, 1:fh]).T
    w_inv[fhp, :L] = sign / L                                # Nyquist

    dt = jnp.dtype(mat_dtype_name)
    return jnp.asarray(w_fwd, dtype=dt), jnp.asarray(w_inv, dtype=dt)


# --------------------------------------------------------------------------
# Kernel: fused rfft -> |X|^2 -> top-k threshold -> mask -> irfft -> trend.
# --------------------------------------------------------------------------
def _dft_decomp_kernel(x_ref, wf_ref, wi_ref, season_ref, trend_ref, *,
                       fh, rows_zero, b_valid, top_k):
    x = x_ref[...]                                           # [Bp, Lp] f32
    bp = x.shape[0]
    two_fhp = wf_ref.shape[1]
    fhp = two_fhp // 2

    # ---- forward rfft: one fused MXU matmul (f32 accumulation) ----
    xf = jnp.dot(x.astype(wf_ref.dtype), wf_ref[...],
                 preferred_element_type=jnp.float32)         # [Bp, 2*Fhp]

    # Per-bin squared magnitude (sqrt dropped: monotone, identical comparisons),
    # replicated across both halves via one XLU roll so the keep-mask applies to
    # the fused xf in place (no slice/concatenate round trip).
    sq = xf * xf
    swapped = pltpu.roll(sq, shift=fhp, axis=1)              # swap Re/Im halves
    col = lax.broadcasted_iota(jnp.int32, sq.shape, 1)
    pair_base = (col == 0) | (col == fhp)                    # DC column / Nyquist column
    freq2 = jnp.where(pair_base, sq, sq + swapped)

    # freq[0] = 0: PyTorch zeroes the whole dim-0 slice -> first `rows_zero` rows.
    row = lax.broadcasted_iota(jnp.int32, (bp, 1), 0)
    freq2 = jnp.where(row < rows_zero, jnp.float32(0.0), freq2)

    # ---- global threshold: min over real rows of each row's k-th largest bin ----
    # Duplicate-aware: knock out exactly ONE occurrence of the max, (k-1) times.
    neg = jnp.float32(-jnp.inf)
    valid = (col < fh) | (col == fhp)                        # each bin counted once
    work = jnp.where(valid, freq2, neg)
    for _ in range(top_k - 1):
        m = jnp.max(work, axis=-1, keepdims=True)            # [Bp, 1]
        first = jnp.min(jnp.where(work == m, col, two_fhp),
                        axis=-1, keepdims=True)               # first argmax
        work = jnp.where(col == first, neg, work)
    kth = jnp.max(work, axis=-1, keepdims=True)               # [Bp, 1]
    kth = jnp.where(row < b_valid, kth, jnp.float32(jnp.inf))  # ignore batch padding
    threshold = jnp.min(kth)                                   # scalar (in squared domain)

    # xf[freq <= thr] = 0  <=>  keep only bins with freq2 > threshold
    keep = freq2 > threshold
    xf_masked = jnp.where(keep, xf, jnp.float32(0.0))

    # ---- inverse irfft: one fused MXU matmul (K = 2*Fhp) ----
    season = jnp.dot(xf_masked.astype(wi_ref.dtype), wi_ref[...],
                     preferred_element_type=jnp.float32)       # [Bp, Lp]

    season_ref[...] = season.astype(season_ref.dtype)
    trend_ref[...] = (x - season).astype(trend_ref.dtype)


# --------------------------------------------------------------------------
# Wrapper.
# --------------------------------------------------------------------------
@functools.partial(jax.jit, static_argnames=("top_k",))
def _dft_decomp_impl(x, w_fwd, w_inv, *, top_k):
    orig_shape = x.shape
    orig_dtype = x.dtype
    L = orig_shape[-1]
    lead = orig_shape[:-1]
    B = int(np.prod(lead)) if lead else 1
    rows_zero = int(np.prod(lead[1:])) if len(lead) > 1 else 1

    fh = L // 2
    fhp = _round_up(fh, _LANE)
    lp = _round_up(L, _LANE)
    sub = 8 if jnp.dtype(w_fwd.dtype).itemsize >= 4 else 16   # f32 / bf16 sublane packing
    bp = _round_up(B, sub)

    x2 = x.reshape(B, L).astype(jnp.float32)
    x_pad = jnp.pad(x2, ((0, bp - B), (0, lp - L)))            # lane/sublane-dense layout

    # VMEM budget: always set a limit; cap well below physical (v7x has 64 MiB).
    msz = jnp.dtype(w_fwd.dtype).itemsize
    need = ((w_fwd.size + w_inv.size) * msz                    # resident weights
            + 3 * bp * lp * 4                                   # x, season, trend
            + 6 * bp * (2 * fhp) * 4)                           # xf / freq2 / work / masks
    try:
        cap = int(pltpu.get_tpu_info().vmem_capacity_bytes)
    except Exception:
        cap = 64 << 20
    limit = int(min(max(2 * need + (8 << 20), 24 << 20), (cap * 3) // 4))

    vmem = pl.BlockSpec(memory_space=pltpu.MemorySpace.VMEM)
    kernel = functools.partial(_dft_decomp_kernel, fh=fh, rows_zero=rows_zero,
                               b_valid=B, top_k=top_k)
    season_p, trend_p = pl.pallas_call(
        kernel,
        out_shape=(jax.ShapeDtypeStruct((bp, lp), jnp.float32),
                   jax.ShapeDtypeStruct((bp, lp), jnp.float32)),
        in_specs=[vmem, vmem, vmem],
        out_specs=(vmem, vmem),
        compiler_params=pltpu.CompilerParams(vmem_limit_bytes=limit),
    )(x_pad, w_fwd, w_inv)

    season = season_p[:B, :L].reshape(orig_shape).astype(orig_dtype)
    trend = trend_p[:B, :L].reshape(orig_shape).astype(orig_dtype)
    return season, trend


def dft_series_decomp(x, top_k=TOP_K, mat_dtype=jnp.bfloat16):
    """x: [..., L] with ndim >= 2, L even, L//2+1 >= top_k.

    Returns (season, trend), each with x's shape/dtype.  Default uses bf16 DFT
    weights (f32 accumulation); pass mat_dtype=jnp.float32 for exact fidelity.
    """
    assert x.ndim >= 2, "need a leading dim so that `freq[0] = 0` has PyTorch semantics"
    L = x.shape[-1]
    assert L % 2 == 0, "irfft(rfft(x)) round-trip requires even L"
    assert L // 2 + 1 >= top_k, "need at least top_k rfft bins"
    w_fwd, w_inv = _dft_mats(int(L), jnp.dtype(mat_dtype).name)
    return _dft_decomp_impl(x, w_fwd, w_inv, top_k=int(top_k))


def reference(x, top_k=TOP_K):
    """Pure-JAX replica of the exact PyTorch semantics (for verification)."""
    xf = jnp.fft.rfft(x, axis=-1)
    freq = jnp.abs(xf)
    freq = freq.at[0].set(0.0)
    topk_vals, _ = lax.top_k(freq, top_k)
    thr = jnp.min(topk_vals)
    xf = jnp.where(freq <= thr, 0.0 + 0.0j, xf)
    season = jnp.fft.irfft(xf, axis=-1)
    return season.astype(x.dtype), (x - season).astype(x.dtype)


if __name__ == "__main__":
    key = jax.random.PRNGKey(0)
    B, L = 4, 16
    x = jax.random.normal(key, (B, L), dtype=jnp.float32)

    s_ref, t_ref = reference(x)

    # default: bf16 weights (perf mode) -> loose tolerance
    season, trend = dft_series_decomp(x)
    jax.block_until_ready((season, trend))
    assert season.shape == (B, L) and trend.shape == (B, L)
    assert jnp.max(jnp.abs(season - s_ref)) < 1e-1, "season mismatch (bf16 default)"
    assert jnp.max(jnp.abs(trend - t_ref)) < 1e-1, "trend mismatch (bf16 default)"

    # f32 weights: exact-fidelity mode -> tight tolerance
    season32, trend32 = dft_series_decomp(x, mat_dtype=jnp.float32)
    jax.block_until_ready((season32, trend32))
    assert jnp.allclose(season32, s_ref, atol=1e-3, rtol=1e-3), "season mismatch (f32)"
    assert jnp.allclose(trend32, t_ref, atol=1e-3, rtol=1e-3), "trend mismatch (f32)"

    # 3-D input exercises the batch-flattening + generalized freq[0]=0 row mask
    x3 = jax.random.normal(jax.random.PRNGKey(1), (2, 3, 16), dtype=jnp.float32)
    s3_ref, t3_ref = reference(x3)
    s3, t3 = dft_series_decomp(x3, mat_dtype=jnp.float32)
    jax.block_until_ready((s3, t3))
    assert s3.shape == x3.shape and t3.shape == x3.shape
    assert jnp.allclose(s3, s3_ref, atol=1e-3, rtol=1e-3), "season mismatch (3-D f32)"
    assert jnp.allclose(t3, t3_ref, atol=1e-3, rtol=1e-3), "trend mismatch (3-D f32)"

    print("KERNEL_OK")
</pallas_src>

<mosaic_0001>
module attributes {stable_mosaic.version = 11 : i64} {
  func.func @_dft_decomp_kernel(%arg0: memref<16x128xf32, #tpu.memory_space<vmem>>, %arg1: memref<128x256xbf16, #tpu.memory_space<vmem>>, %arg2: memref<256x128xbf16, #tpu.memory_space<vmem>>, %arg3: memref<16x128xf32, #tpu.memory_space<vmem>>, %arg4: memref<16x128xf32, #tpu.memory_space<vmem>>) attributes {dimension_semantics = [], scalar_prefetch = 0 : i64, scratch_operands = 0 : i64, tpu.core_type = #tpu.core_type<tc>} {
    %c0 = arith.constant 0 : index
    %c0_0 = arith.constant 0 : index
    %0 = vector.load %arg0[%c0, %c0_0] : memref<16x128xf32, #tpu.memory_space<vmem>>, vector<16x128xf32>
    %1 = arith.truncf %0 : vector<16x128xf32> to vector<16x128xbf16>
    %c0_1 = arith.constant 0 : index
    %c0_2 = arith.constant 0 : index
    %2 = vector.load %arg1[%c0_1, %c0_2] : memref<128x256xbf16, #tpu.memory_space<vmem>>, vector<128x256xbf16>
    %cst = arith.constant dense<0.000000e+00> : vector<16x256xf32>
    %3 = tpu.matmul %1, %2, %cst {dimension_numbers = #tpu.dot_dimension_numbers<[1], [0], [0], [1], [0, 0, 1, 1], [], []>} : vector<16x128xbf16>, vector<128x256xbf16>, vector<16x256xf32> -> vector<16x256xf32>
    %4 = arith.mulf %3, %3 : vector<16x256xf32>
    %c128_i32 = arith.constant 128 : i32
    %5 = tpu.dynamic_rotate %4 by %c128_i32 dim 1 : vector<16x256xf32>, i32 -> vector<16x256xf32>
    %6 = tpu.iota {dimensions = array<i32: 1>} : vector<16x256xi32>
    %c0_i32 = arith.constant 0 : i32
    %7 = vector.broadcast %c0_i32 : i32 to vector<16x256xi32>
    %8 = arith.cmpi eq, %6, %7 : vector<16x256xi32>
    %c128_i32_3 = arith.constant 128 : i32
    %9 = vector.broadcast %c128_i32_3 : i32 to vector<16x256xi32>
    %10 = arith.cmpi eq, %6, %9 : vector<16x256xi32>
    %11 = arith.ori %8, %10 : vector<16x256xi1>
    %12 = arith.addf %4, %5 : vector<16x256xf32>
    %13 = arith.select %11, %4, %12 : vector<16x256xi1>, vector<16x256xf32>
    %14 = tpu.iota {dimensions = array<i32: 0>} : vector<16x1xi32>
    %c1_i32 = arith.constant 1 : i32
    %15 = vector.broadcast %c1_i32 : i32 to vector<16x1xi32>
    %16 = arith.cmpi slt, %14, %15 : vector<16x1xi32>
    %cst_4 = arith.constant 0.000000e+00 : f32
    %17 = vector.shape_cast %16 : vector<16x1xi1> to vector<16x1xi1>
    %18 = vector.broadcast %17 : vector<16x1xi1> to vector<16x256xi1>
    %19 = vector.broadcast %cst_4 : f32 to vector<16x256xf32>
    %20 = arith.select %18, %19, %13 : vector<16x256xi1>, vector<16x256xf32>
    %c8_i32 = arith.constant 8 : i32
    %21 = vector.broadcast %c8_i32 : i32 to vector<16x256xi32>
    %22 = arith.cmpi slt, %6, %21 : vector<16x256xi32>
    %c128_i32_5 = arith.constant 128 : i32
    %23 = vector.broadcast %c128_i32_5 : i32 to vector<16x256xi32>
    %24 = arith.cmpi eq, %6, %23 : vector<16x256xi32>
    %25 = arith.ori %22, %24 : vector<16x256xi1>
    %cst_6 = arith.constant 0xFF800000 : f32
    %26 = vector.broadcast %cst_6 : f32 to vector<16x256xf32>
    %27 = arith.select %25, %20, %26 : vector<16x256xi1>, vector<16x256xf32>
    %cst_7 = arith.constant dense<0xFF800000> : vector<16xf32>
    %28 = vector.multi_reduction <maximumf>, %27, %cst_7 [1] : vector<16x256xf32> to vector<16xf32>
    %29 = vector.shape_cast %28 : vector<16xf32> to vector<16x1xf32>
    %30 = vector.broadcast %29 : vector<16x1xf32> to vector<16x256xf32>
    %31 = arith.cmpf oeq, %27, %30 : vector<16x256xf32>
    %c256_i32 = arith.constant 256 : i32
    %32 = vector.broadcast %c256_i32 : i32 to vector<16x256xi32>
    %33 = arith.select %31, %6, %32 : vector<16x256xi1>, vector<16x256xi32>
    %cst_8 = arith.constant dense<2147483647> : vector<16xi32>
    %34 = vector.multi_reduction <minsi>, %33, %cst_8 [1] : vector<16x256xi32> to vector<16xi32>
    %35 = vector.shape_cast %34 : vector<16xi32> to vector<16x1xi32>
    %36 = vector.broadcast %35 : vector<16x1xi32> to vector<16x256xi32>
    %37 = arith.cmpi eq, %6, %36 : vector<16x256xi32>
    %cst_9 = arith.constant 0xFF800000 : f32
    %38 = vector.broadcast %cst_9 : f32 to vector<16x256xf32>
    %39 = arith.select %37, %38, %27 : vector<16x256xi1>, vector<16x256xf32>
    %cst_10 = arith.constant dense<0xFF800000> : vector<16xf32>
    %40 = vector.multi_reduction <maximumf>, %39, %cst_10 [1] : vector<16x256xf32> to vector<16xf32>
    %41 = vector.shape_cast %40 : vector<16xf32> to vector<16x1xf32>
    %42 = vector.broadcast %41 : vector<16x1xf32> to vector<16x256xf32>
    %43 = arith.cmpf oeq, %39, %42 : vector<16x256xf32>
    %c256_i32_11 = arith.constant 256 : i32
    %44 = vector.broadcast %c256_i32_11 : i32 to vector<16x256xi32>
    %45 = arith.select %43, %6, %44 : vector<16x256xi1>, vector<16x256xi32>
    %cst_12 = arith.constant dense<2147483647> : vector<16xi32>
    %46 = vector.multi_reduction <minsi>, %45, %cst_12 [1] : vector<16x256xi32> to vector<16xi32>
    %47 = vector.shape_cast %46 : vector<16xi32> to vector<16x1xi32>
    %48 = vector.broadcast %47 : vector<16x1xi32> to vector<16x256xi32>
    %49 = arith.cmpi eq, %6, %48 : vector<16x256xi32>
    %cst_13 = arith.constant 0xFF800000 : f32
    %50 = vector.broadcast %cst_13 : f32 to vector<16x256xf32>
    %51 = arith.select %49, %50, %39 : vector<16x256xi1>, vector<16x256xf32>
    %cst_14 = arith.constant dense<0xFF800000> : vector<16xf32>
    %52 = vector.multi_reduction <maximumf>, %51, %cst_14 [1] : vector<16x256xf32> to vector<16xf32>
    %53 = vector.shape_cast %52 : vector<16xf32> to vector<16x1xf32>
    %54 = vector.broadcast %53 : vector<16x1xf32> to vector<16x256xf32>
    %55 = arith.cmpf oeq, %51, %54 : vector<16x256xf32>
    %c256_i32_15 = arith.constant 256 : i32
    %56 = vector.broadcast %c256_i32_15 : i32 to vector<16x256xi32>
    %57 = arith.select %55, %6, %56 : vector<16x256xi1>, vector<16x256xi32>
    %cst_16 = arith.constant dense<2147483647> : vector<16xi32>
    %58 = vector.multi_reduction <minsi>, %57, %cst_16 [1] : vector<16x256xi32> to vector<16xi32>
    %59 = vector.shape_cast %58 : vector<16xi32> to vector<16x1xi32>
    %60 = vector.broadcast %59 : vector<16x1xi32> to vector<16x256xi32>
    %61 = arith.cmpi eq, %6, %60 : vector<16x256xi32>
    %cst_17 = arith.constant 0xFF800000 : f32
    %62 = vector.broadcast %cst_17 : f32 to vector<16x256xf32>
    %63 = arith.select %61, %62, %51 : vector<16x256xi1>, vector<16x256xf32>
    %cst_18 = arith.constant dense<0xFF800000> : vector<16xf32>
    %64 = vector.multi_reduction <maximumf>, %63, %cst_18 [1] : vector<16x256xf32> to vector<16xf32>
    %65 = vector.shape_cast %64 : vector<16xf32> to vector<16x1xf32>
    %66 = vector.broadcast %65 : vector<16x1xf32> to vector<16x256xf32>
    %67 = arith.cmpf oeq, %63, %66 : vector<16x256xf32>
    %c256_i32_19 = arith.constant 256 : i32
    %68 = vector.broadcast %c256_i32_19 : i32 to vector<16x256xi32>
    %69 = arith.select %67, %6, %68 : vector<16x256xi1>, vector<16x256xi32>
    %cst_20 = arith.constant dense<2147483647> : vector<16xi32>
    %70 = vector.multi_reduction <minsi>, %69, %cst_20 [1] : vector<16x256xi32> to vector<16xi32>
    %71 = vector.shape_cast %70 : vector<16xi32> to vector<16x1xi32>
    %72 = vector.broadcast %71 : vector<16x1xi32> to vector<16x256xi32>
    %73 = arith.cmpi eq, %6, %72 : vector<16x256xi32>
    %cst_21 = arith.constant 0xFF800000 : f32
    %74 = vector.broadcast %cst_21 : f32 to vector<16x256xf32>
    %75 = arith.select %73, %74, %63 : vector<16x256xi1>, vector<16x256xf32>
    %cst_22 = arith.constant dense<0xFF800000> : vector<16xf32>
    %76 = vector.multi_reduction <maximumf>, %75, %cst_22 [1] : vector<16x256xf32> to vector<16xf32>
    %77 = vector.shape_cast %76 : vector<16xf32> to vector<16x1xf32>
    %c4_i32 = arith.constant 4 : i32
    %78 = vector.broadcast %c4_i32 : i32 to vector<16x1xi32>
    %79 = arith.cmpi slt, %14, %78 : vector<16x1xi32>
    %cst_23 = arith.constant 0x7F800000 : f32
    %80 = vector.broadcast %cst_23 : f32 to vector<16x1xf32>
    %81 = arith.select %79, %77, %80 : vector<16x1xi1>, vector<16x1xf32>
    %82 = vector.shape_cast %81 : vector<16x1xf32> to vector<1x16x1xf32>
    %cst_24 = arith.constant dense<0x7F800000> : vector<1xf32>
    %83 = vector.multi_reduction <minimumf>, %82, %cst_24 [1, 2] : vector<1x16x1xf32> to vector<1xf32>
    %84 = vector.shape_cast %83 : vector<1xf32> to vector<1x1x1xf32>
    %85 = vector.extract %84[0, 0, 0] : f32 from vector<1x1x1xf32>
    %86 = vector.broadcast %85 : f32 to vector<16x256xf32>
    %87 = arith.cmpf ogt, %20, %86 : vector<16x256xf32>
    %cst_25 = arith.constant 0.000000e+00 : f32
    %88 = vector.broadcast %cst_25 : f32 to vector<16x256xf32>
    %89 = arith.select %87, %3, %88 : vector<16x256xi1>, vector<16x256xf32>
    %90 = arith.truncf %89 : vector<16x256xf32> to vector<16x256xbf16>
    %c0_26 = arith.constant 0 : index
    %c0_27 = arith.constant 0 : index
    %91 = vector.load %arg2[%c0_26, %c0_27] : memref<256x128xbf16, #tpu.memory_space<vmem>>, vector<256x128xbf16>
    %cst_28 = arith.constant dense<0.000000e+00> : vector<16x128xf32>
    %92 = tpu.matmul %90, %91, %cst_28 {dimension_numbers = #tpu.dot_dimension_numbers<[1], [0], [0], [1], [0, 0, 1, 1], [], []>} : vector<16x256xbf16>, vector<256x128xbf16>, vector<16x128xf32> -> vector<16x128xf32>
    %c0_29 = arith.constant 0 : index
    %c0_30 = arith.constant 0 : index
    %93 = vector.load %arg3[%c0_29, %c0_30] : memref<16x128xf32, #tpu.memory_space<vmem>>, vector<16x128xf32>
    tpu.vector_store %arg3[%c0_29, %c0_30], %92 {strides = array<i32>} : memref<16x128xf32, #tpu.memory_space<vmem>>, vector<16x128xf32>,
    %94 = arith.subf %0, %92 : vector<16x128xf32>
    %c0_31 = arith.constant 0 : index
    %c0_32 = arith.constant 0 : index
    %95 = vector.load %arg4[%c0_31, %c0_32] : memref<16x128xf32, #tpu.memory_space<vmem>>, vector<16x128xf32>
    tpu.vector_store %arg4[%c0_31, %c0_32], %94 {strides = array<i32>} : memref<16x128xf32, #tpu.memory_space<vmem>>, vector<16x128xf32>,
    return
  }
}

</mosaic_0001>

<llo_original>
// kernel: _dft_decomp_impl.1
$region0: #{_dft_decomp_impl.1}
  #allocation0 [shape = 'u32[]', space=smem, size = 0x4, offset = 0x4, fixed_abs, tag = 'smem constant byte address 0x4 - core index']
  #allocation1 [shape = 'u32[144,128]{1,0:T(1,128)}', space=vmem, size = 0x12000, scoped, tag = 'internal scratch']
  %s0 = inlined_call_operand.vmem [shape: f32[16,128], index: 0, kind: input, shape index: {}]
  %s1 = inlined_call_operand.hbm [shape: bf16[128,256], index: 1, kind: input, shape index: {}]
  %s2 = inlined_call_operand.hbm [shape: bf16[256,128], index: 2, kind: input, shape index: {}]
  %s3 = inlined_call_operand.vmem [shape: f32[16,128], index: 3, kind: output, shape index: {0}]
  %s4 = inlined_call_operand.vmem [shape: f32[16,128], index: 4, kind: output, shape index: {1}]
  %5 = xla_tuple %s3, %s4
  %s6 = sld [smem:[#allocation0]]
  $region38: #{_dft_decomp_impl.1} parent=0
    _
  %s8 = ssub.s32 1, %s6
  %s9 = scalar_select 0, %s8, %s6
  $region1: #{_dft_decomp_impl.1} parent=0
    #allocation2 [shape = 'u8[65536]{0}', space=vmem, size = 0x10000, scoped, tag = 'input window, operand 1, single buffered']
    #allocation3 [shape = 's32[1]{0}', space=sflag, size = 0x4, scoped, tag = 'scoped memory for _dft_decomp_impl.1']
    #allocation4 [shape = 'u8[65536]{0}', space=vmem, size = 0x10000, scoped, tag = 'input window, operand 2, single buffered']
    #allocation5 [shape = 's32[1]{0}', space=sflag, size = 0x4, scoped, tag = 'scoped memory for _dft_decomp_impl.1']
    %10 = vsyncpa [#allocation3], 0
    %11 = vsyncpa [#allocation5], 0
    // Predicated region
    $region2: #{_dft_decomp_impl.1} parent=1 // pred_check
      _
    $region3: #{_dft_decomp_impl.1} parent=1 // pred_check_branch
      %13 = sbr.rel (0) target = $region5
    $region4: #{_dft_decomp_impl.1} parent=1 // pred_region
      _
    $region5: #{_dft_decomp_impl.1} parent=1 // pred_fallthru
      _
    // Predicated region
    $region6: #{_dft_decomp_impl.1} parent=1 // pred_check
      _
    $region7: #{_dft_decomp_impl.1} parent=1 // pred_check_branch
      %15 = sbr.rel (0) target = $region9
    $region8: #{_dft_decomp_impl.1} parent=1 // pred_region
      %s17 = ssub.s32 2048, 2048
      %18 = vsyncadd [#allocation3], %s17
      %s19 = sshll.u32 [#allocation2], 4
      %s20 = int_to_ptr.vmem [resolvable:$true] %s19
      %25 = dma.hbm_to_vmem [thread:$0]  %s1, 2048, %s20, [#allocation3], 128, 128, 8
    $region9: #{_dft_decomp_impl.1} parent=1 // pred_fallthru
      _
    // Predicated region
    $region10: #{_dft_decomp_impl.1} parent=1 // pred_check
      _
    $region11: #{_dft_decomp_impl.1} parent=1 // pred_check_branch
      %27 = sbr.rel (0) target = $region13
    $region12: #{_dft_decomp_impl.1} parent=1 // pred_region
      %s29 = ssub.s32 2048, 2048
      %30 = vsyncadd [#allocation5], %s29
      %s31 = sshll.u32 [#allocation4], 4
      %s32 = int_to_ptr.vmem [resolvable:$true] %s31
      %37 = dma.hbm_to_vmem [thread:$0]  %s2, 2048, %s32, [#allocation5], 64, 64, 4
    $region13: #{_dft_decomp_impl.1} parent=1 // pred_fallthru
      _
    // Predicated region
    $region14: #{_dft_decomp_impl.1} parent=1 // pred_check
      _
    $region15: #{_dft_decomp_impl.1} parent=1 // pred_check_branch
      %39 = sbr.rel (0) target = $region17
    $region16: #{_dft_decomp_impl.1} parent=1 // pred_region
      %40 = dma.done [#allocation3], 2048
    $region17: #{_dft_decomp_impl.1} parent=1 // pred_fallthru
      _
    // Predicated region
    $region18: #{_dft_decomp_impl.1} parent=1 // pred_check
      _
    $region19: #{_dft_decomp_impl.1} parent=1 // pred_check_branch
      %42 = sbr.rel (0) target = $region21
    $region20: #{_dft_decomp_impl.1} parent=1 // pred_region
      %43 = dma.done [#allocation5], 2048
    $region21: #{_dft_decomp_impl.1} parent=1 // pred_fallthru
      _
    %v45 = vld [vmem:[%s0] sm:$0xff]
    %v46 = vld [vmem:[%s0 + $0x8] sm:$0xff]
    %v47 = vpack.c.bf16 %v46, %v45
    %v48 = vld [vmem:[#allocation2] sm:$0xff]
    %v49 = vld [vmem:[#allocation2 + $0x8] sm:$0xff]
    %v50 = vld [vmem:[#allocation2 + $0x10] sm:$0xff]
    %v51 = vld [vmem:[#allocation2 + $0x18] sm:$0xff]
    %v52 = vld [vmem:[#allocation2 + $0x20] sm:$0xff]
    %v53 = vld [vmem:[#allocation2 + $0x28] sm:$0xff]
    %v54 = vld [vmem:[#allocation2 + $0x30] sm:$0xff]
    %v55 = vld [vmem:[#allocation2 + $0x38] sm:$0xff]
    %v56 = vld [vmem:[#allocation2 + $0x40] sm:$0xff]
    %v57 = vld [vmem:[#allocation2 + $0x48] sm:$0xff]
    %v58 = vld [vmem:[#allocation2 + $0x50] sm:$0xff]
    %v59 = vld [vmem:[#allocation2 + $0x58] sm:$0xff]
    %v60 = vld [vmem:[#allocation2 + $0x60] sm:$0xff]
    %v61 = vld [vmem:[#allocation2 + $0x68] sm:$0xff]
    %v62 = vld [vmem:[#allocation2 + $0x70] sm:$0xff]
    %v63 = vld [vmem:[#allocation2 + $0x78] sm:$0xff]
    %v80 = vunpack.c.l.b16 %v48
    %v81 = vunpack.c.h.b16 %v48
    %v82 = vunpack.c.l.b16 %v49
    %v83 = vunpack.c.h.b16 %v49
    %v84 = vunpack.c.l.b16 %v50
    %v85 = vunpack.c.h.b16 %v50
    %v86 = vunpack.c.l.b16 %v51
    %v87 = vunpack.c.h.b16 %v51
    %v88 = vunpack.c.l.b16 %v52
    %v89 = vunpack.c.h.b16 %v52
    %v90 = vunpack.c.l.b16 %v53
    %v91 = vunpack.c.h.b16 %v53
    %v92 = vunpack.c.l.b16 %v54
    %v93 = vunpack.c.h.b16 %v54
    %v94 = vunpack.c.l.b16 %v55
    %v95 = vunpack.c.h.b16 %v55
    %v96 = vunpack.c.l.b16 %v56
    %v97 = vunpack.c.h.b16 %v56
    %v98 = vunpack.c.l.b16 %v57
    %v99 = vunpack.c.h.b16 %v57
    %v100 = vunpack.c.l.b16 %v58
    %v101 = vunpack.c.h.b16 %v58
    %v102 = vunpack.c.l.b16 %v59
    %v103 = vunpack.c.h.b16 %v59
    %v104 = vunpack.c.l.b16 %v60
    %v105 = vunpack.c.h.b16 %v60
    %v106 = vunpack.c.l.b16 %v61
    %v107 = vunpack.c.h.b16 %v61
    %v108 = vunpack.c.l.b16 %v62
    %v109 = vunpack.c.h.b16 %v62
    %v110 = vunpack.c.l.b16 %v63
    %v111 = vunpack.c.h.b16 %v63
    %v112 = vpack.c.b16 %v82, %v80
    %v113 = vpack.c.b16 %v83, %v81
    %v114 = vpack.c.b16 %v86, %v84
    %v115 = vpack.c.b16 %v87, %v85
    %v116 = vpack.c.b16 %v90, %v88
    %v117 = vpack.c.b16 %v91, %v89
    %v118 = vpack.c.b16 %v94, %v92
    %v119 = vpack.c.b16 %v95, %v93
    %v120 = vpack.c.b16 %v98, %v96
    %v121 = vpack.c.b16 %v99, %v97
    %v122 = vpack.c.b16 %v102, %v100
    %v123 = vpack.c.b16 %v103, %v101
    %v124 = vpack.c.b16 %v106, %v104
    %v125 = vpack.c.b16 %v107, %v105
    %v126 = vpack.c.b16 %v110, %v108
    %v127 = vpack.c.b16 %v111, %v109
    %144 = vmatprep.subr.bf16.mxu0 %v127
    %145 = vmatpush1.bf16.msra.mxu0 %v126
    %146 = vmatprep.subr.bf16.mxu0 %v125
    %147 = vmatpush1.bf16.msra.mxu0 %v124
    %148 = vmatprep.subr.bf16.mxu0 %v123
    %149 = vmatpush1.bf16.msra.mxu0 %v122
    %150 = vmatprep.subr.bf16.mxu0 %v121
    %151 = vmatpush1.bf16.msra.mxu0 %v120
    %152 = vmatprep.subr.bf16.mxu0 %v119
    %153 = vmatpush1.bf16.msra.mxu0 %v118
    %154 = vmatprep.subr.bf16.mxu0 %v117
    %155 = vmatpush1.bf16.msra.mxu0 %v116
    %156 = vmatprep.subr.bf16.mxu0 %v115
    %157 = vmatpush1.bf16.msra.mxu0 %v114
    %158 = vmatprep.subr.bf16.mxu0 %v113
    %159 = vmatpush1.bf16.msra.mxu0 %v112
    %160 = vmatprep.subr.bf16.mxu0 0
    %161 = vmatpush2.bf16.msra.mxu0 0
    %162 = vmatprep.subr.bf16.mxu0 0
    %163 = vmatpush2.bf16.msra.mxu0 0
    %164 = vmatprep.subr.bf16.mxu0 0
    %165 = vmatpush2.bf16.msra.mxu0 0
    %166 = vmatprep.subr.bf16.mxu0 0
    %167 = vmatpush2.bf16.msra.mxu0 0
    %168 = vmatprep.subr.bf16.mxu0 0
    %169 = vmatpush2.bf16.msra.mxu0 0
    %170 = vmatprep.subr.bf16.mxu0 0
    %171 = vmatpush2.bf16.msra.mxu0 0
    %172 = vmatprep.subr.bf16.mxu0 0
    %173 = vmatpush2.bf16.msra.mxu0 0
    %174 = vmatprep.subr.bf16.mxu0 0
    %175 = vmatpush2.bf16.msra.mxu0 0
    %176 = vmatprep.mubr.bf16.mxu0 0
    %177 = vmatmul.mubr.bf16.gmra.mxu0 %v47
    %v178 = vpop.f32.mrf.mxu0
    %v179 = vadd.f32 0.0, %v178
    %v180 = vpop.f32.mrf.mxu0
    %v181 = vadd.f32 0.0, %v180
    %v182 = vpop.f32.mrf.mxu0
    %v183 = vadd.f32 0.0, %v182
    %v184 = vpop.f32.mrf.mxu0
    %v185 = vadd.f32 0.0, %v184
    %186 = vdwg.mxu0
    %v187 = vmul.f32 %v179, %v179
    %v188 = vmul.f32 %v181, %v181
    %v189 = vmul.f32 %v183, %v183
    %v190 = vmul.f32 %v185, %v185
    %v191 = vlaneseq
    %v192 = vand.u32 %v191, 127
    %v193 = vadd.s32 %v192, 128
    %vm194 = vcmp.eq.s32.totalorder %v192, 0
    %vm195 = vcmp.eq.s32.totalorder %v193, 0
    %vm196 = vcmp.eq.s32.totalorder %v192, 128
    %vm197 = vcmp.eq.s32.totalorder %v193, 128
    %vm198 = vmor %vm194, %vm196
    %vm199 = vmor %vm195, %vm197
    %v200 = vadd.f32 %v187, %v188
    %v201 = vadd.f32 %v189, %v190
    %v202 = vsel %vm198, %v187, %v200
    %v203 = vsel %vm199, %v188, %v200
    %v204 = vsel %vm198, %v189, %v201
    %v205 = vsel %vm199, %v190, %v201
    %v206 = vlaneseq
    %v207 = vshrl.u32 %v206, 7
    %v208 = vadd.s32 %v207, 8
    %vm209 = vcmp.lt.s32.totalorder %v207, 1
    %vm210 = vcmp.lt.s32.totalorder %v208, 1
    %v211 = vsel %vm209, 1, 0
    %v212 = vsel %vm210, 1, 0
    %vm213 = vcmp.eq.s32.totalorder %v211, 1
    %vm214 = vcmp.eq.s32.totalorder %v212, 1
    %v215 = vsel %vm213, 0.0, %v202
    %v216 = vsel %vm213, 0.0, %v203
    %v217 = vsel %vm214, 0.0, %v204
    %v218 = vsel %vm214, 0.0, %v205
    %vm219 = vcmp.lt.s32.totalorder %v192, 8
    %vm220 = vcmp.lt.s32.totalorder %v193, 8
    %vm221 = vmor %vm219, %vm196
    %vm222 = vmor %vm220, %vm197
    %v223 = vsel %vm221, %v215, -inf
    %v224 = vsel %vm222, %v216, -inf
    %v225 = vsel %vm221, %v217, -inf
    %v226 = vsel %vm222, %v218, -inf
    %v227 = vmax.f32 %v223, %v224
    %228 = vmax.xlane.f32.xlu0 %v227
    %v229 = vpop.xlane.xlu0 %228
    %v230 = vmax.f32 %v225, %v226
    %231 = vmax.xlane.f32.xlu0 %v230
    %v232 = vpop.xlane.xlu0 %231
    %vm233 = vcmp.eq.f32.partialorder %v223, %v229
    %vm234 = vcmp.eq.f32.partialorder %v224, %v229
    %vm235 = vcmp.eq.f32.partialorder %v225, %v232
    %vm236 = vcmp.eq.f32.partialorder %v226, %v232
    %v237 = vsel %vm233, %v192, 256
    %v238 = vsel %vm234, %v193, 256
    %v239 = vsel %vm235, %v192, 256
    %v240 = vsel %vm236, %v193, 256
    %vm241 = vcmp.lt.s32.totalorder %v237, %v238
    %v242 = vsel %vm241, %v237, %v238
    %v243 = vand.u32 %v242, 65535
    %v244 = vshra.s32 %v242, 16
    %v245 = vcvt.s32.f32 %v243
    %v246 = vcvt.s32.f32 %v244
    %247 = vmin.xlane.f32.xlu0 %v246
    %v248 = vpop.xlane.xlu0 %247
    %vm249 = vcmp.eq.f32.partialorder %v246, %v248
    %v250 = vsel %vm249, %v245, inf
    %251 = vmin.xlane.f32.xlu0 %v250
    %v252 = vpop.xlane.xlu0 %251
    %v253 = vcvt.f32.s32 %v252
    %v254 = vcvt.f32.s32 %v248
    %v255 = vshll.u32 %v254, 16
    %v256 = vadd.s32 %v255, %v253
    %vm257 = vcmp.lt.s32.totalorder %v239, %v240
    %v258 = vsel %vm257, %v239, %v240
    %v259 = vand.u32 %v258, 65535
    %v260 = vshra.s32 %v258, 16
    %v261 = vcvt.s32.f32 %v259
    %v262 = vcvt.s32.f32 %v260
    %263 = vmin.xlane.f32.xlu0 %v262
    %v264 = vpop.xlane.xlu0 %263
    %vm265 = vcmp.eq.f32.partialorder %v262, %v264
    %v266 = vsel %vm265, %v261, inf
    %267 = vmin.xlane.f32.xlu0 %v266
    %v268 = vpop.xlane.xlu0 %267
    %v269 = vcvt.f32.s32 %v268
    %v270 = vcvt.f32.s32 %v264
    %v271 = vshll.u32 %v270, 16
    %v272 = vadd.s32 %v271, %v269
    %vm273 = vcmp.eq.s32.totalorder %v192, %v256
    %vm274 = vcmp.eq.s32.totalorder %v193, %v256
    %vm275 = vcmp.eq.s32.totalorder %v192, %v272
    %vm276 = vcmp.eq.s32.totalorder %v193, %v272
    %v277 = vsel %vm273, -inf, %v223
    %v278 = vsel %vm274, -inf, %v224
    %v279 = vsel %vm275, -inf, %v225
    %v280 = vsel %vm276, -inf, %v226
    %v281 = vmax.f32 %v277, %v278
    %282 = vmax.xlane.f32.xlu0 %v281
    %v283 = vpop.xlane.xlu0 %282
    %v284 = vmax.f32 %v279, %v280
    %285 = vmax.xlane.f32.xlu0 %v284
    %v286 = vpop.xlane.xlu0 %285
    %vm287 = vcmp.eq.f32.partialorder %v277, %v283
    %vm288 = vcmp.eq.f32.partialorder %v278, %v283
    %vm289 = vcmp.eq.f32.partialorder %v279, %v286
    %vm290 = vcmp.eq.f32.partialorder %v280, %v286
    %v291 = vsel %vm287, %v192, 256
    %v292 = vsel %vm288, %v193, 256
    %v293 = vsel %vm289, %v192, 256
    %v294 = vsel %vm290, %v193, 256
    %vm295 = vcmp.lt.s32.totalorder %v291, %v292
    %v296 = vsel %vm295, %v291, %v292
    %v297 = vand.u32 %v296, 65535
    %v298 = vshra.s32 %v296, 16
    %v299 = vcvt.s32.f32 %v297
    %v300 = vcvt.s32.f32 %v298
    %301 = vmin.xlane.f32.xlu0 %v300
    %v302 = vpop.xlane.xlu0 %301
    %vm303 = vcmp.eq.f32.partialorder %v300, %v302
    %v304 = vsel %vm303, %v299, inf
    %305 = vmin.xlane.f32.xlu0 %v304
    %v306 = vpop.xlane.xlu0 %305
    %v307 = vcvt.f32.s32 %v306
    %v308 = vcvt.f32.s32 %v302
    %v309 = vshll.u32 %v308, 16
    %v310 = vadd.s32 %v309, %v307
    %vm311 = vcmp.lt.s32.totalorder %v293, %v294
    %v312 = vsel %vm311, %v293, %v294
    %v313 = vand.u32 %v312, 65535
    %v314 = vshra.s32 %v312, 16
    %v315 = vcvt.s32.f32 %v313
    %v316 = vcvt.s32.f32 %v314
    %317 = vmin.xlane.f32.xlu0 %v316
    %v318 = vpop.xlane.xlu0 %317
    %vm319 = vcmp.eq.f32.partialorder %v316, %v318
    %v320 = vsel %vm319, %v315, inf
    %321 = vmin.xlane.f32.xlu0 %v320
    %v322 = vpop.xlane.xlu0 %321
    %v323 = vcvt.f32.s32 %v322
    %v324 = vcvt.f32.s32 %v318
    %v325 = vshll.u32 %v324, 16
    %v326 = vadd.s32 %v325, %v323
    %vm327 = vcmp.eq.s32.totalorder %v192, %v310
    %vm328 = vcmp.eq.s32.totalorder %v193, %v310
    %vm329 = vcmp.eq.s32.totalorder %v192, %v326
    %vm330 = vcmp.eq.s32.totalorder %v193, %v326
    %v331 = vsel %vm327, -inf, %v277
    %v332 = vsel %vm328, -inf, %v278
    %v333 = vsel %vm329, -inf, %v279
    %v334 = vsel %vm330, -inf, %v280
    %v335 = vmax.f32 %v331, %v332
    %336 = vmax.xlane.f32.xlu0 %v335
    %v337 = vpop.xlane.xlu0 %336
    %v338 = vmax.f32 %v333, %v334
    %339 = vmax.xlane.f32.xlu0 %v338
    %v340 = vpop.xlane.xlu0 %339
    %vm341 = vcmp.eq.f32.partialorder %v331, %v337
    %vm342 = vcmp.eq.f32.partialorder %v332, %v337
    %vm343 = vcmp.eq.f32.partialorder %v333, %v340
    %vm344 = vcmp.eq.f32.partialorder %v334, %v340
    %v345 = vsel %vm341, %v192, 256
    %v346 = vsel %vm342, %v193, 256
    %v347 = vsel %vm343, %v192, 256
    %v348 = vsel %vm344, %v193, 256
    %vm349 = vcmp.lt.s32.totalorder %v345, %v346
    %v350 = vsel %vm349, %v345, %v346
    %v351 = vand.u32 %v350, 65535
    %v352 = vshra.s32 %v350, 16
    %v353 = vcvt.s32.f32 %v351
    %v354 = vcvt.s32.f32 %v352
    %355 = vmin.xlane.f32.xlu0 %v354
    %v356 = vpop.xlane.xlu0 %355
    %vm357 = vcmp.eq.f32.partialorder %v354, %v356
    %v358 = vsel %vm357, %v353, inf
    %359 = vmin.xlane.f32.xlu0 %v358
    %v360 = vpop.xlane.xlu0 %359
    %v361 = vcvt.f32.s32 %v360
    %v362 = vcvt.f32.s32 %v356
    %v363 = vshll.u32 %v362, 16
    %v364 = vadd.s32 %v363, %v361
    %vm365 = vcmp.lt.s32.totalorder %v347, %v348
    %v366 = vsel %vm365, %v347, %v348
    %v367 = vand.u32 %v366, 65535
    %v368 = vshra.s32 %v366, 16
    %v369 = vcvt.s32.f32 %v367
    %v370 = vcvt.s32.f32 %v368
    %371 = vmin.xlane.f32.xlu0 %v370
    %v372 = vpop.xlane.xlu0 %371
    %vm373 = vcmp.eq.f32.partialorder %v370, %v372
    %v374 = vsel %vm373, %v369, inf
    %375 = vmin.xlane.f32.xlu0 %v374
    %v376 = vpop.xlane.xlu0 %375
    %v377 = vcvt.f32.s32 %v376
    %v378 = vcvt.f32.s32 %v372
    %v379 = vshll.u32 %v378, 16
    %v380 = vadd.s32 %v379, %v377
    %vm381 = vcmp.eq.s32.totalorder %v192, %v364
    %vm382 = vcmp.eq.s32.totalorder %v193, %v364
    %vm383 = vcmp.eq.s32.totalorder %v192, %v380
    %vm384 = vcmp.eq.s32.totalorder %v193, %v380
    %v385 = vsel %vm381, -inf, %v331
    %v386 = vsel %vm382, -inf, %v332
    %v387 = vsel %vm383, -inf, %v333
    %v388 = vsel %vm384, -inf, %v334
    %v389 = vmax.f32 %v385, %v386
    %390 = vmax.xlane.f32.xlu0 %v389
    %v391 = vpop.xlane.xlu0 %390
    %v392 = vmax.f32 %v387, %v388
    %393 = vmax.xlane.f32.xlu0 %v392
    %v394 = vpop.xlane.xlu0 %393
    %vm395 = vcmp.eq.f32.partialorder %v385, %v391
    %vm396 = vcmp.eq.f32.partialorder %v386, %v391
    %vm397 = vcmp.eq.f32.partialorder %v387, %v394
    %vm398 = vcmp.eq.f32.partialorder %v388, %v394
    %v399 = vsel %vm395, %v192, 256
    %v400 = vsel %vm396, %v193, 256
    %v401 = vsel %vm397, %v192, 256
    %v402 = vsel %vm398, %v193, 256
    %vm403 = vcmp.lt.s32.totalorder %v399, %v400
    %v404 = vsel %vm403, %v399, %v400
    %v405 = vand.u32 %v404, 65535
    %v406 = vshra.s32 %v404, 16
    %v407 = vcvt.s32.f32 %v405
    %v408 = vcvt.s32.f32 %v406
    %409 = vmin.xlane.f32.xlu0 %v408
    %v410 = vpop.xlane.xlu0 %409
    %vm411 = vcmp.eq.f32.partialorder %v408, %v410
    %v412 = vsel %vm411, %v407, inf
    %413 = vmin.xlane.f32.xlu0 %v412
    %v414 = vpop.xlane.xlu0 %413
    %v415 = vcvt.f32.s32 %v414
    %v416 = vcvt.f32.s32 %v410
    %v417 = vshll.u32 %v416, 16
    %v418 = vadd.s32 %v417, %v415
    %vm419 = vcmp.lt.s32.totalorder %v401, %v402
    %v420 = vsel %vm419, %v401, %v402
    %v421 = vand.u32 %v420, 65535
    %v422 = vshra.s32 %v420, 16
    %v423 = vcvt.s32.f32 %v421
    %v424 = vcvt.s32.f32 %v422
    %425 = vmin.xlane.f32.xlu0 %v424
    %v426 = vpop.xlane.xlu0 %425
    %vm427 = vcmp.eq.f32.partialorder %v424, %v426
    %v428 = vsel %vm427, %v423, inf
    %429 = vmin.xlane.f32.xlu0 %v428
    %v430 = vpop.xlane.xlu0 %429
    %v431 = vcvt.f32.s32 %v430
    %v432 = vcvt.f32.s32 %v426
    %v433 = vshll.u32 %v432, 16
    %v434 = vadd.s32 %v433, %v431
    %vm435 = vcmp.eq.s32.totalorder %v192, %v418
    %vm436 = vcmp.eq.s32.totalorder %v193, %v418
    %vm437 = vcmp.eq.s32.totalorder %v192, %v434
    %vm438 = vcmp.eq.s32.totalorder %v193, %v434
    %v439 = vsel %vm435, -inf, %v385
    %v440 = vsel %vm436, -inf, %v386
    %v441 = vsel %vm437, -inf, %v387
    %v442 = vsel %vm438, -inf, %v388
    %v443 = vmax.f32 %v439, %v440
    %444 = vmax.xlane.f32.xlu0 %v443
    %v445 = vpop.xlane.xlu0 %444
    %v446 = vmax.f32 %v441, %v442
    %447 = vmax.xlane.f32.xlu0 %v446
    %v448 = vpop.xlane.xlu0 %447
    %vm449 = vcmp.lt.s32.totalorder %v207, 4
    %vm450 = vcmp.lt.s32.totalorder %v208, 4
    %v451 = vsel %vm449, %v445, inf
    %v452 = vsel %vm450, %v448, inf
    %v453 = vmin.f32 %v451, %v452
    %v454 = vrot.slane %v453, 4
    %v455 = vmin.f32 %v453, %v454
    %v456 = vrot.slane %v455, 2
    %v457 = vmin.f32 %v455, %v456
    %v458 = vrot.slane %v457, 1
    %v459 = vmin.f32 %v457, %v458
    %s460 = vtos %v459
    %v461 = vstv %s460
    %vm462 = vcmp.gt.f32.partialorder %v215, %v461
    %vm463 = vcmp.gt.f32.partialorder %v216, %v461
    %vm464 = vcmp.gt.f32.partialorder %v217, %v461
    %vm465 = vcmp.gt.f32.partialorder %v218, %v461
    %v466 = vsel %vm462, %v179, 0.0
    %v467 = vsel %vm463, %v181, 0.0
    %v468 = vsel %vm464, %v183, 0.0
    %v469 = vsel %vm465, %v185, 0.0
    %v470 = vpack.c.bf16 %v468, %v466
    %v471 = vpack.c.bf16 %v469, %v467
    %v472 = vld [vmem:[#allocation4] sm:$0xf]
    %v473 = vld [vmem:[#allocation4 + $0x4] sm:$0xf]
    %v474 = vld [vmem:[#allocation4 + $0x8] sm:$0xf]
    %v475 = vld [vmem:[#allocation4 + $0xc] sm:$0xf]
    %v476 = vld [vmem:[#allocation4 + $0x10] sm:$0xf]
    %v477 = vld [vmem:[#allocation4 + $0x14] sm:$0xf]
    %v478 = vld [vmem:[#allocation4 + $0x18] sm:$0xf]
    %v479 = vld [vmem:[#allocation4 + $0x1c] sm:$0xf]
    %v480 = vld [vmem:[#allocation4 + $0x20] sm:$0xf]
    %v481 = vld [vmem:[#allocation4 + $0x24] sm:$0xf]
    %v482 = vld [vmem:[#allocation4 + $0x28] sm:$0xf]
    %v483 = vld [vmem:[#allocation4 + $0x2c] sm:$0xf]
    %v484 = vld [vmem:[#allocation4 + $0x30] sm:$0xf]
    %v485 = vld [vmem:[#allocation4 + $0x34] sm:$0xf]
    %v486 = vld [vmem:[#allocation4 + $0x38] sm:$0xf]
    %v487 = vld [vmem:[#allocation4 + $0x3c] sm:$0xf]
    %v488 = vld [vmem:[#allocation4 + $0x40] sm:$0xf]
    %v489 = vld [vmem:[#allocation4 + $0x44] sm:$0xf]
    %v490 = vld [vmem:[#allocation4 + $0x48] sm:$0xf]
    %v491 = vld [vmem:[#allocation4 + $0x4c] sm:$0xf]
    %v492 = vld [vmem:[#allocation4 + $0x50] sm:$0xf]
    %v493 = vld [vmem:[#allocation4 + $0x54] sm:$0xf]
    %v494 = vld [vmem:[#allocation4 + $0x58] sm:$0xf]
    %v495 = vld [vmem:[#allocation4 + $0x5c] sm:$0xf]
    %v496 = vld [vmem:[#allocation4 + $0x60] sm:$0xf]
    %v497 = vld [vmem:[#allocation4 + $0x64] sm:$0xf]
    %v498 = vld [vmem:[#allocation4 + $0x68] sm:$0xf]
    %v499 = vld [vmem:[#allocation4 + $0x6c] sm:$0xf]
    %v500 = vld [vmem:[#allocation4 + $0x70] sm:$0xf]
    %v501 = vld [vmem:[#allocation4 + $0x74] sm:$0xf]
    %v502 = vld [vmem:[#allocation4 + $0x78] sm:$0xf]
    %v503 = vld [vmem:[#allocation4 + $0x7c] sm:$0xf]
    %v536 = vunpack.c.l.b16 %v472
    %v537 = vunpack.c.l.b16 %v473
    %v538 = vunpack.c.l.b16 %v474
    %v539 = vunpack.c.l.b16 %v475
    %v540 = vunpack.c.l.b16 %v476
    %v541 = vunpack.c.l.b16 %v477
    %v542 = vunpack.c.l.b16 %v478
    %v543 = vunpack.c.l.b16 %v479
    %v544 = vunpack.c.l.b16 %v480
    %v545 = vunpack.c.l.b16 %v481
    %v546 = vunpack.c.l.b16 %v482
    %v547 = vunpack.c.l.b16 %v483
    %v548 = vunpack.c.l.b16 %v484
    %v549 = vunpack.c.l.b16 %v485
    %v550 = vunpack.c.l.b16 %v486
    %v551 = vunpack.c.l.b16 %v487
    %v552 = vunpack.c.l.b16 %v488
    %v553 = vunpack.c.l.b16 %v489
    %v554 = vunpack.c.l.b16 %v490
    %v555 = vunpack.c.l.b16 %v491
    %v556 = vunpack.c.l.b16 %v492
    %v557 = vunpack.c.l.b16 %v493
    %v558 = vunpack.c.l.b16 %v494
    %v559 = vunpack.c.l.b16 %v495
    %v560 = vunpack.c.l.b16 %v496
    %v561 = vunpack.c.l.b16 %v497
    %v562 = vunpack.c.l.b16 %v498
    %v563 = vunpack.c.l.b16 %v499
    %v564 = vunpack.c.l.b16 %v500
    %v565 = vunpack.c.l.b16 %v501
    %v566 = vunpack.c.l.b16 %v502
    %v567 = vunpack.c.l.b16 %v503
    %v568 = vpack.c.b16 %v537, %v536
    %v569 = vpack.c.b16 %v539, %v538
    %v570 = vpack.c.b16 %v541, %v540
    %v571 = vpack.c.b16 %v543, %v542
    %v572 = vpack.c.b16 %v545, %v544
    %v573 = vpack.c.b16 %v547, %v546
    %v574 = vpack.c.b16 %v549, %v548
    %v575 = vpack.c.b16 %v551, %v550
    %v576 = vpack.c.b16 %v553, %v552
    %v577 = vpack.c.b16 %v555, %v554
    %v578 = vpack.c.b16 %v557, %v556
    %v579 = vpack.c.b16 %v559, %v558
    %v580 = vpack.c.b16 %v561, %v560
    %v581 = vpack.c.b16 %v563, %v562
    %v582 = vpack.c.b16 %v565, %v564
    %v583 = vpack.c.b16 %v567, %v566
    %600 = vmatprep.subr.bf16.mxu0 0
    %601 = vmatpush1.bf16.msra.mxu0 %v575
    %602 = vmatprep.subr.bf16.mxu0 0
    %603 = vmatpush1.bf16.msra.mxu0 %v574
    %604 = vmatprep.subr.bf16.mxu0 0
    %605 = vmatpush1.bf16.msra.mxu0 %v573
    %606 = vmatprep.subr.bf16.mxu0 0
    %607 = vmatpush1.bf16.msra.mxu0 %v572
    %608 = vmatprep.subr.bf16.mxu0 0
    %609 = vmatpush1.bf16.msra.mxu0 %v571
    %610 = vmatprep.subr.bf16.mxu0 0
    %611 = vmatpush1.bf16.msra.mxu0 %v570
    %612 = vmatprep.subr.bf16.mxu0 0
    %613 = vmatpush1.bf16.msra.mxu0 %v569
    %614 = vmatprep.subr.bf16.mxu0 0
    %615 = vmatpush1.bf16.msra.mxu0 %v568
    %616 = vmatprep.subr.bf16.mxu0 0
    %617 = vmatpush2.bf16.msra.mxu0 %v583
    %618 = vmatprep.subr.bf16.mxu0 0
    %619 = vmatpush2.bf16.msra.mxu0 %v582
    %620 = vmatprep.subr.bf16.mxu0 0
    %621 = vmatpush2.bf16.msra.mxu0 %v581
    %622 = vmatprep.subr.bf16.mxu0 0
    %623 = vmatpush2.bf16.msra.mxu0 %v580
    %624 = vmatprep.subr.bf16.mxu0 0
    %625 = vmatpush2.bf16.msra.mxu0 %v579
    %626 = vmatprep.subr.bf16.mxu0 0
    %627 = vmatpush2.bf16.msra.mxu0 %v578
    %628 = vmatprep.subr.bf16.mxu0 0
    %629 = vmatpush2.bf16.msra.mxu0 %v577
    %630 = vmatprep.subr.bf16.mxu0 0
    %631 = vmatpush2.bf16.msra.mxu0 %v576
    %632 = vmatprep.mubr.bf16.mxu0 %v471
    %633 = vmatmul.mubr.bf16.gmra.mxu0 %v470
    %v634 = vpop.f32.mrf.mxu0
    %v635 = vadd.f32 0.0, %v634
    %v636 = vpop.f32.mrf.mxu0
    %v637 = vpop.f32.mrf.mxu0
    %v638 = vadd.f32 0.0, %v637
    %v639 = vpop.f32.mrf.mxu0
    %640 = vdwg.mxu0
    %641 = vst [vmem:[%s3] sm:$0xff] %v635
    %642 = vst [vmem:[%s3 + $0x8] sm:$0xff] %v638
    %v643 = vsub.f32 %v45, %v635
    %v644 = vsub.f32 %v46, %v638
    %645 = vst [vmem:[%s4] sm:$0xff] %v643
    %646 = vst [vmem:[%s4 + $0x8] sm:$0xff] %v644
    // Predicated region
    $region22: #{_dft_decomp_impl.1} parent=1 // pred_check
      _
    $region23: #{_dft_decomp_impl.1} parent=1 // pred_check_branch
      %648 = sbr.rel (0) target = $region25
    $region24: #{_dft_decomp_impl.1} parent=1 // pred_region
      _
    $region25: #{_dft_decomp_impl.1} parent=1 // pred_fallthru
      _
    // Predicated region
    $region26: #{_dft_decomp_impl.1} parent=1 // pred_check
      _
    $region27: #{_dft_decomp_impl.1} parent=1 // pred_check_branch
      %650 = sbr.rel (0) target = $region29
    $region28: #{_dft_decomp_impl.1} parent=1 // pred_region
      _
    $region29: #{_dft_decomp_impl.1} parent=1 // pred_fallthru
      _
    // Predicated region
    $region30: #{_dft_decomp_impl.1} parent=1 // pred_check
      _
    $region31: #{_dft_decomp_impl.1} parent=1 // pred_check_branch
      %652 = sbr.rel (0) target = $region33
    $region32: #{_dft_decomp_impl.1} parent=1 // pred_region
      _
    $region33: #{_dft_decomp_impl.1} parent=1 // pred_fallthru
      _
    // Predicated region
    $region34: #{_dft_decomp_impl.1} parent=1 // pred_check
      _
    $region35: #{_dft_decomp_impl.1} parent=1 // pred_check_branch
      %654 = sbr.rel (0) target = $region37
    $region36: #{_dft_decomp_impl.1} parent=1 // pred_region
      _
    $region37: #{_dft_decomp_impl.1} parent=1 // pred_fallthru
      _
    %655 = vsyncpa [#allocation3], 1
    %656 = vsyncpa [#allocation5], 1

</llo_original>
